<compile_context>
chip_gen: v7x
topology: tpu7x:2x2x1
jax: 0.10.0
libtpu: 0.0.40
codegen_flags: <defaults>
</compile_context>

<pallas_src>
import functools

import jax
import jax.numpy as jnp
from jax.experimental import pallas as pl
from jax.experimental.pallas import tpu as pltpu


IN_FEATURES = 20
HIDDEN = 256
OUT_FEATURES = 10


def _round_up(x, m):
    return ((x + m - 1) // m) * m


# Single-buffer the VMEM-resident weights/biases when the API supports it
# (their block index never changes, so double-buffering them is wasted VMEM).
try:
    pl.BlockSpec((8, 128), lambda i: (0, 0), pipeline_mode=pl.Buffered(1))
    _RESIDENT_PIPELINE = {"pipeline_mode": pl.Buffered(1)}
except Exception:  # older jax: fall back to default double-buffering
    _RESIDENT_PIPELINE = {}


def mlp_kernel(x_ref, w1_ref, b1_ref, w2_ref, b2_ref, o_ref):
    # In-kernel f32 -> bf16 cast: free VPU filler under the MXU/DMA, avoids an
    # extra wrapper-side XLA pass (and extra HBM traffic) over x.
    x = x_ref[...].astype(jnp.bfloat16)
    # hidden layer: (TILE_B, 20) @ (20, 256), f32 accumulation on the MXU
    h = jnp.dot(x, w1_ref[...], preferred_element_type=jnp.float32)
    h = jnp.maximum(h + b1_ref[...], 0.0)                  # bias + ReLU (f32 VPU)
    # output layer: (TILE_B, 256) @ (256, 10), f32 accumulation
    y = jnp.dot(h.astype(jnp.bfloat16), w2_ref[...],
                preferred_element_type=jnp.float32)
    o_ref[...] = (y + b2_ref[...]).astype(o_ref.dtype)


def prepare_params(w1, b1, w2, b2):
    """One-time weight prep, hoisted out of the per-call forward path.

    w1: (20, 256), b1: (256,), w2: (256, 10), b2: (10,)  -- weights stored
    pre-transposed as (in_features, out_features) relative to nn.Linear.
    """
    return (w1.astype(jnp.bfloat16),
            b1.reshape(1, HIDDEN).astype(jnp.float32),
            w2.astype(jnp.bfloat16),
            b2.reshape(1, OUT_FEATURES).astype(jnp.float32))


@functools.partial(jax.jit, static_argnames=("tile_b",))
def mlp_forward(x, w1_bf, b1_f, w2_bf, b2_f, tile_b=2048):
    """x: (B, 20) float32. Returns (B, 10) float32 == output(relu(hidden(x)))."""
    B = x.shape[0]

    # Batch tile: as large as possible (amortize per-grid-step overhead),
    # multiple of 16, and -- when the batch allows -- at least 2 grid steps so
    # v7x's two TensorCores both get work.
    if B >= 2 * tile_b:
        TILE_B = tile_b
    elif B > 16:
        TILE_B = _round_up((B + 1) // 2, 16)
    else:
        TILE_B = _round_up(max(B, 1), 16)
    B_pad = _round_up(B, TILE_B)
    if B_pad != B:
        # Only the ragged tail gets padded; batches that are multiples of
        # TILE_B skip this copy entirely.
        x = jnp.pad(x, ((0, B_pad - B), (0, 0)))

    grid = (B_pad // TILE_B,)

    def _resident(shape):
        # weights/biases: constant block index -> VMEM-resident across steps
        return pl.BlockSpec(shape, lambda i: (0, 0), **_RESIDENT_PIPELINE)

    out = pl.pallas_call(
        mlp_kernel,
        out_shape=jax.ShapeDtypeStruct((B_pad, OUT_FEATURES), jnp.float32),
        grid=grid,
        in_specs=[
            # activations: tiled along batch, auto double-buffered
            pl.BlockSpec((TILE_B, IN_FEATURES), lambda i: (i, 0)),
            _resident((IN_FEATURES, HIDDEN)),      # w1 (bf16)
            _resident((1, HIDDEN)),                # b1 (f32)
            _resident((HIDDEN, OUT_FEATURES)),     # w2 (bf16), unpadded
            _resident((1, OUT_FEATURES)),          # b2 (f32), unpadded
        ],
        out_specs=pl.BlockSpec((TILE_B, OUT_FEATURES), lambda i: (i, 0)),
        compiler_params=pltpu.CompilerParams(
            dimension_semantics=("parallel",)),
    )(x, w1_bf, b1_f, w2_bf, b2_f)

    # NOTE: padded rows contain relu(b1) @ w2 + b2 (not zeros); this slice is
    # what makes them unobservable -- do not remove it.
    return out[:B] if B_pad != B else out


def init_params(key):
    """Deterministic init matching nn.Linear shapes (weights pre-transposed)."""
    k1, k2, k3, k4 = jax.random.split(key, 4)
    lim1 = 1.0 / jnp.sqrt(jnp.float32(IN_FEATURES))
    lim2 = 1.0 / jnp.sqrt(jnp.float32(HIDDEN))
    w1 = jax.random.uniform(k1, (IN_FEATURES, HIDDEN), jnp.float32, -lim1, lim1)
    b1 = jax.random.uniform(k2, (HIDDEN,), jnp.float32, -lim1, lim1)
    w2 = jax.random.uniform(k3, (HIDDEN, OUT_FEATURES), jnp.float32, -lim2, lim2)
    b2 = jax.random.uniform(k4, (OUT_FEATURES,), jnp.float32, -lim2, lim2)
    return w1, b1, w2, b2


def _reference(x, w1, b1, w2, b2):
    # reference on the same bf16-rounded operands (kernel accumulates in f32)
    xr = x.astype(jnp.bfloat16).astype(jnp.float32)
    w1r = w1.astype(jnp.bfloat16).astype(jnp.float32)
    w2r = w2.astype(jnp.bfloat16).astype(jnp.float32)
    h = jnp.maximum(xr @ w1r + b1[None, :], 0.0)
    return h.astype(jnp.bfloat16).astype(jnp.float32) @ w2r + b2[None, :]


if __name__ == "__main__":
    key = jax.random.PRNGKey(0)
    kx, kp = jax.random.split(key)

    w1, b1, w2, b2 = init_params(kp)
    params = prepare_params(w1, b1, w2, b2)   # one-time weight prep (hoisted)

    # x = torch.randn(size=(2, 20))  -> batch=2, in_features=20
    x = jax.random.normal(kx, (2, IN_FEATURES), jnp.float32)
    out = mlp_forward(x, *params)
    jax.block_until_ready(out)
    assert out.shape == (2, OUT_FEATURES)
    ref = _reference(x, w1, b1, w2, b2)
    assert jnp.allclose(out, ref, atol=2e-2, rtol=2e-2), (
        f"max abs err = {float(jnp.max(jnp.abs(out - ref)))}")

    # exercise the multi-step grid path (ragged batch -> 2 grid steps)
    x2 = jax.random.normal(kx, (48, IN_FEATURES), jnp.float32)
    out2 = mlp_forward(x2, *params)
    jax.block_until_ready(out2)
    assert out2.shape == (48, OUT_FEATURES)
    ref2 = _reference(x2, w1, b1, w2, b2)
    assert jnp.allclose(out2, ref2, atol=2e-2, rtol=2e-2), (
        f"max abs err = {float(jnp.max(jnp.abs(out2 - ref2)))}")

    print("KERNEL_OK")
</pallas_src>

<mosaic_0001>
module attributes {stable_mosaic.version = 11 : i64} {
  func.func @mlp_kernel(%arg0: i32, %arg1: memref<16x20xf32, #tpu.memory_space<vmem>>, %arg2: memref<20x256xbf16, #tpu.memory_space<vmem>>, %arg3: memref<1x256xf32, #tpu.memory_space<vmem>>, %arg4: memref<256x10xbf16, #tpu.memory_space<vmem>>, %arg5: memref<1x10xf32, #tpu.memory_space<vmem>>, %arg6: memref<16x10xf32, #tpu.memory_space<vmem>>) attributes {dimension_semantics = [#tpu.dimension_semantics<parallel>], iteration_bounds = array<i64: 1>, scalar_prefetch = 0 : i64, scratch_operands = 0 : i64, tpu.core_type = #tpu.core_type<tc>, window_params = [{transform_indices = @transform_0, window_bounds = array<i64: 16, 20>}, {pipeline_mode = #tpu.pipeline_mode<synchronous>, transform_indices = @transform_1, window_bounds = array<i64: 20, 256>}, {pipeline_mode = #tpu.pipeline_mode<synchronous>, transform_indices = @transform_2, window_bounds = array<i64: 1, 256>}, {pipeline_mode = #tpu.pipeline_mode<synchronous>, transform_indices = @transform_3, window_bounds = array<i64: 256, 10>}, {pipeline_mode = #tpu.pipeline_mode<synchronous>, transform_indices = @transform_4, window_bounds = array<i64: 1, 10>}, {transform_indices = @transform_5, window_bounds = array<i64: 16, 10>}]} {
    %c0 = arith.constant 0 : index
    %c0_0 = arith.constant 0 : index
    %0 = vector.load %arg1[%c0, %c0_0] : memref<16x20xf32, #tpu.memory_space<vmem>>, vector<16x20xf32>
    %1 = arith.truncf %0 : vector<16x20xf32> to vector<16x20xbf16>
    %c0_1 = arith.constant 0 : index
    %c0_2 = arith.constant 0 : index
    %2 = vector.load %arg2[%c0_1, %c0_2] : memref<20x256xbf16, #tpu.memory_space<vmem>>, vector<20x256xbf16>
    %cst = arith.constant dense<0.000000e+00> : vector<16x256xf32>
    %3 = tpu.matmul %1, %2, %cst {dimension_numbers = #tpu.dot_dimension_numbers<[1], [0], [0], [1], [0, 0, 1, 1], [], []>} : vector<16x20xbf16>, vector<20x256xbf16>, vector<16x256xf32> -> vector<16x256xf32>
    %c0_3 = arith.constant 0 : index
    %c0_4 = arith.constant 0 : index
    %4 = vector.load %arg3[%c0_3, %c0_4] : memref<1x256xf32, #tpu.memory_space<vmem>>, vector<1x256xf32>
    %5 = vector.broadcast %4 : vector<1x256xf32> to vector<16x256xf32>
    %6 = arith.addf %3, %5 : vector<16x256xf32>
    %cst_5 = arith.constant 0.000000e+00 : f32
    %7 = vector.broadcast %cst_5 : f32 to vector<16x256xf32>
    %8 = arith.maximumf %6, %7 : vector<16x256xf32>
    %9 = arith.truncf %8 : vector<16x256xf32> to vector<16x256xbf16>
    %c0_6 = arith.constant 0 : index
    %c0_7 = arith.constant 0 : index
    %10 = vector.load %arg4[%c0_6, %c0_7] : memref<256x10xbf16, #tpu.memory_space<vmem>>, vector<256x10xbf16>
    %cst_8 = arith.constant dense<0.000000e+00> : vector<16x10xf32>
    %11 = tpu.matmul %9, %10, %cst_8 {dimension_numbers = #tpu.dot_dimension_numbers<[1], [0], [0], [1], [0, 0, 1, 1], [], []>} : vector<16x256xbf16>, vector<256x10xbf16>, vector<16x10xf32> -> vector<16x10xf32>
    %c0_9 = arith.constant 0 : index
    %c0_10 = arith.constant 0 : index
    %12 = vector.load %arg5[%c0_9, %c0_10] : memref<1x10xf32, #tpu.memory_space<vmem>>, vector<1x10xf32>
    %13 = vector.broadcast %12 : vector<1x10xf32> to vector<16x10xf32>
    %14 = arith.addf %11, %13 : vector<16x10xf32>
    %c0_11 = arith.constant 0 : index
    %c0_12 = arith.constant 0 : index
    %15 = vector.load %arg6[%c0_11, %c0_12] : memref<16x10xf32, #tpu.memory_space<vmem>>, vector<16x10xf32>
    tpu.vector_store %arg6[%c0_11, %c0_12], %14 {strides = array<i32>} : memref<16x10xf32, #tpu.memory_space<vmem>>, vector<16x10xf32>,
    return
  }
  func.func @transform_0(%arg0: i32) -> (i32, i32) {
    %c0_i32 = arith.constant 0 : i32
    %c0_i32_0 = arith.constant 0 : i32
    return %arg0, %c0_i32 : i32, i32
  }
  func.func @transform_1(%arg0: i32) -> (i32, i32) {
    %c0_i32 = arith.constant 0 : i32
    %c0_i32_0 = arith.constant 0 : i32
    %c0_i32_1 = arith.constant 0 : i32
    return %c0_i32, %c0_i32_0 : i32, i32
  }
  func.func @transform_2(%arg0: i32) -> (i32, i32) {
    %c0_i32 = arith.constant 0 : i32
    %c0_i32_0 = arith.constant 0 : i32
    %c0_i32_1 = arith.constant 0 : i32
    return %c0_i32, %c0_i32_0 : i32, i32
  }
  func.func @transform_3(%arg0: i32) -> (i32, i32) {
    %c0_i32 = arith.constant 0 : i32
    %c0_i32_0 = arith.constant 0 : i32
    %c0_i32_1 = arith.constant 0 : i32
    return %c0_i32, %c0_i32_0 : i32, i32
  }
  func.func @transform_4(%arg0: i32) -> (i32, i32) {
    %c0_i32 = arith.constant 0 : i32
    %c0_i32_0 = arith.constant 0 : i32
    %c0_i32_1 = arith.constant 0 : i32
    return %c0_i32, %c0_i32_0 : i32, i32
  }
  func.func @transform_5(%arg0: i32) -> (i32, i32) {
    %c0_i32 = arith.constant 0 : i32
    %c0_i32_0 = arith.constant 0 : i32
    return %arg0, %c0_i32 : i32, i32
  }
}

</mosaic_0001>

<llo_original>
// kernel: mlp_forward.1
$region0: #{mlp_forward.1}
  #allocation0 [shape = 'u32[]', space=smem, size = 0x4, offset = 0x4, fixed_abs, tag = 'smem constant byte address 0x4 - core index']
  #allocation1 [shape = 'u32[144,128]{1,0:T(1,128)}', space=vmem, size = 0x12000, scoped, tag = 'internal scratch']
  %s0 = inlined_call_operand.vmem [shape: f32[16,20], index: 0, kind: input, shape index: {}]
  %s1 = inlined_call_operand.vmem [shape: bf16[20,256], index: 1, kind: input, shape index: {}]
  %s2 = inlined_call_operand.vmem [shape: f32[1,256], index: 2, kind: input, shape index: {}]
  %s3 = inlined_call_operand.vmem [shape: bf16[256,10], index: 3, kind: input, shape index: {}]
  %s4 = inlined_call_operand.vmem [shape: f32[1,10], index: 4, kind: input, shape index: {}]
  %s5 = inlined_call_operand.vmem [shape: f32[16,10], index: 5, kind: output, shape index: {}]
  %s6 = sld [smem:[#allocation0]]
  $region30: #{mlp_forward.1} parent=0
    _
  %s8 = ssub.s32 1, %s6
  %s9 = scalar_select 0, %s8, %s6
  // Predicated region
  $region2: #{mlp_forward.1} parent=0 // pred_check
    _
  $region3: #{mlp_forward.1} parent=0 // pred_check_branch
    %11 = sbr.rel (0) target = $region5
  $region4: #{mlp_forward.1} parent=0 // pred_region
    _
  $region5: #{mlp_forward.1} parent=0 // pred_fallthru
    _
  // Predicated region
  $region6: #{mlp_forward.1} parent=0 // pred_check
    _
  $region7: #{mlp_forward.1} parent=0 // pred_check_branch
    %13 = sbr.rel (0) target = $region9
  $region8: #{mlp_forward.1} parent=0 // pred_region
    _
  $region9: #{mlp_forward.1} parent=0 // pred_fallthru
    _
  // Predicated region
  $region10: #{mlp_forward.1} parent=0 // pred_check
    _
  $region11: #{mlp_forward.1} parent=0 // pred_check_branch
    %15 = sbr.rel (0) target = $region13
  $region12: #{mlp_forward.1} parent=0 // pred_region
    _
  $region13: #{mlp_forward.1} parent=0 // pred_fallthru
    _
  // Predicated region
  $region14: #{mlp_forward.1} parent=0 // pred_check
    _
  $region15: #{mlp_forward.1} parent=0 // pred_check_branch
    %17 = sbr.rel (0) target = $region17
  $region16: #{mlp_forward.1} parent=0 // pred_region
    _
  $region17: #{mlp_forward.1} parent=0 // pred_fallthru
    _
  // Predicated region
  $region18: #{mlp_forward.1} parent=0 // pred_check
    _
  $region19: #{mlp_forward.1} parent=0 // pred_check_branch
    %19 = sbr.rel (0) target = $region21
  $region20: #{mlp_forward.1} parent=0 // pred_region
    _
  $region21: #{mlp_forward.1} parent=0 // pred_fallthru
    _
  %v21 = vld [vmem:[%s0] sm:$0xff]
  %v22 = vld [vmem:[%s0 + $0x8] sm:$0xff]
  %v23 = vpack.c.bf16 %v22, %v21
  %v24 = vld [vmem:[%s1] sm:$0xff]
  %v25 = vld [vmem:[%s1 + $0x8] sm:$0xff]
  %v26 = vld [vmem:[%s1 + $0x10] sm:$0x33]
  %v27 = vld [vmem:[%s2] sm:$0x3]
  %v29 = vlaneseq
  %v30 = vshrl.u32 %v29, 7
  %v31 = vsub.s32 0, %v30
  %v32 = vrot.slane %v27, %v31
  %v33 = vlaneseq
  %v34 = vshrl.u32 %v33, 7
  %v35 = vsub.s32 1, %v34
  %v36 = vrot.slane %v27, %v35
  %v42 = vunpack.c.l.b16 %v24
  %v43 = vunpack.c.h.b16 %v24
  %v44 = vunpack.c.l.b16 %v25
  %v45 = vunpack.c.h.b16 %v25
  %v46 = vunpack.c.l.b16 %v26
  %v47 = vunpack.c.h.b16 %v26
  %v48 = vpack.c.b16 %v44, %v42
  %v49 = vpack.c.b16 %v45, %v43
  %v50 = vpack.c.b16 %v46, %v46
  %v51 = vpack.c.b16 %v47, %v47
  %vm54 = vcmask 162816
  %v56 = vsel %vm54, %v23, 0
  %vm58 = vcmask 1041408
  %v60 = vsel %vm58, %v50, 0
  %v63 = vsel %vm58, %v51, 0
  %65 = vmatprep.subr.bf16.mxu0 %v49
  %66 = vmatpush1.bf16.msra.mxu0 %v48
  %67 = vmatprep.subr.bf16.mxu0 %v63
  %68 = vmatpush1.bf16.msra.mxu0 %v60
  %69 = vmatprep.subr.bf16.mxu0 0
  %70 = vmatpush1.bf16.msra.mxu0 0
  %71 = vmatprep.subr.bf16.mxu0 0
  %72 = vmatpush1.bf16.msra.mxu0 0
  %73 = vmatprep.subr.bf16.mxu0 0
  %74 = vmatpush1.bf16.msra.mxu0 0
  %75 = vmatprep.subr.bf16.mxu0 0
  %76 = vmatpush1.bf16.msra.mxu0 0
  %77 = vmatprep.subr.bf16.mxu0 0
  %78 = vmatpush1.bf16.msra.mxu0 0
  %79 = vmatprep.subr.bf16.mxu0 0
  %80 = vmatpush1.bf16.msra.mxu0 0
  %81 = vmatprep.subr.bf16.mxu0 0
  %82 = vmatpush1.bf16.msra.mxu0 0
  %83 = vmatprep.subr.bf16.mxu0 0
  %84 = vmatpush1.bf16.msra.mxu0 0
  %85 = vmatprep.subr.bf16.mxu0 0
  %86 = vmatpush1.bf16.msra.mxu0 0
  %87 = vmatprep.subr.bf16.mxu0 0
  %88 = vmatpush1.bf16.msra.mxu0 0
  %89 = vmatprep.subr.bf16.mxu0 0
  %90 = vmatpush1.bf16.msra.mxu0 0
  %91 = vmatprep.subr.bf16.mxu0 0
  %92 = vmatpush1.bf16.msra.mxu0 0
  %93 = vmatprep.subr.bf16.mxu0 0
  %94 = vmatpush1.bf16.msra.mxu0 0
  %95 = vmatprep.subr.bf16.mxu0 0
  %96 = vmatpush1.bf16.msra.mxu0 0
  %97 = vmatprep.mubr.bf16.mxu0 0
  %98 = vmatmul.mubr.bf16.gmra.mrb[0].mxu0 %v56
  %v99 = vpop.f32.mrb[0].mxu0
  %v100 = vadd.f32 %v32, %v99
  %v101 = vpop.f32.mrb[0].mxu0
  %v102 = vadd.f32 %v36, %v101
  %v103 = vpop.f32.mrb[0].mxu0
  %v104 = vadd.f32 %v32, %v103
  %v105 = vpop.f32.mrb[0].mxu0
  %v106 = vadd.f32 %v36, %v105
  %107 = vdwg.mxu0
  %v108 = vmax.f32 %v100, 0.0
  %v109 = vmax.f32 %v102, 0.0
  %v110 = vmax.f32 %v104, 0.0
  %v111 = vmax.f32 %v106, 0.0
  %v112 = vpack.c.bf16 %v110, %v108
  %v113 = vpack.c.bf16 %v111, %v109
  %v114 = vld [vmem:[%s3] sm:$0xf]
  %v115 = vld [vmem:[%s3 + $0x4] sm:$0xf]
  %v116 = vld [vmem:[%s3 + $0x8] sm:$0xf]
  %v117 = vld [vmem:[%s3 + $0xc] sm:$0xf]
  %v118 = vld [vmem:[%s3 + $0x10] sm:$0xf]
  %v119 = vld [vmem:[%s3 + $0x14] sm:$0xf]
  %v120 = vld [vmem:[%s3 + $0x18] sm:$0xf]
  %v121 = vld [vmem:[%s3 + $0x1c] sm:$0xf]
  %v122 = vld [vmem:[%s3 + $0x20] sm:$0xf]
  %v123 = vld [vmem:[%s3 + $0x24] sm:$0xf]
  %v124 = vld [vmem:[%s3 + $0x28] sm:$0xf]
  %v125 = vld [vmem:[%s3 + $0x2c] sm:$0xf]
  %v126 = vld [vmem:[%s3 + $0x30] sm:$0xf]
  %v127 = vld [vmem:[%s3 + $0x34] sm:$0xf]
  %v128 = vld [vmem:[%s3 + $0x38] sm:$0xf]
  %v129 = vld [vmem:[%s3 + $0x3c] sm:$0xf]
  %v130 = vld [vmem:[%s3 + $0x40] sm:$0xf]
  %v131 = vld [vmem:[%s3 + $0x44] sm:$0xf]
  %v132 = vld [vmem:[%s3 + $0x48] sm:$0xf]
  %v133 = vld [vmem:[%s3 + $0x4c] sm:$0xf]
  %v134 = vld [vmem:[%s3 + $0x50] sm:$0xf]
  %v135 = vld [vmem:[%s3 + $0x54] sm:$0xf]
  %v136 = vld [vmem:[%s3 + $0x58] sm:$0xf]
  %v137 = vld [vmem:[%s3 + $0x5c] sm:$0xf]
  %v138 = vld [vmem:[%s3 + $0x60] sm:$0xf]
  %v139 = vld [vmem:[%s3 + $0x64] sm:$0xf]
  %v140 = vld [vmem:[%s3 + $0x68] sm:$0xf]
  %v141 = vld [vmem:[%s3 + $0x6c] sm:$0xf]
  %v142 = vld [vmem:[%s3 + $0x70] sm:$0xf]
  %v143 = vld [vmem:[%s3 + $0x74] sm:$0xf]
  %v144 = vld [vmem:[%s3 + $0x78] sm:$0xf]
  %v145 = vld [vmem:[%s3 + $0x7c] sm:$0xf]
  %v146 = vld [vmem:[%s4] sm:$0x1]
  %v148 = vlaneseq
  %v149 = vshrl.u32 %v148, 7
  %v150 = vsub.s32 0, %v149
  %v151 = vrot.slane %v146, %v150
  %v185 = vunpack.c.l.b16 %v114
  %v186 = vunpack.c.l.b16 %v115
  %v187 = vunpack.c.l.b16 %v116
  %v188 = vunpack.c.l.b16 %v117
  %v189 = vunpack.c.l.b16 %v118
  %v190 = vunpack.c.l.b16 %v119
  %v191 = vunpack.c.l.b16 %v120
  %v192 = vunpack.c.l.b16 %v121
  %v193 = vunpack.c.l.b16 %v122
  %v194 = vunpack.c.l.b16 %v123
  %v195 = vunpack.c.l.b16 %v124
  %v196 = vunpack.c.l.b16 %v125
  %v197 = vunpack.c.l.b16 %v126
  %v198 = vunpack.c.l.b16 %v127
  %v199 = vunpack.c.l.b16 %v128
  %v200 = vunpack.c.l.b16 %v129
  %v201 = vunpack.c.l.b16 %v130
  %v202 = vunpack.c.l.b16 %v131
  %v203 = vunpack.c.l.b16 %v132
  %v204 = vunpack.c.l.b16 %v133
  %v205 = vunpack.c.l.b16 %v134
  %v206 = vunpack.c.l.b16 %v135
  %v207 = vunpack.c.l.b16 %v136
  %v208 = vunpack.c.l.b16 %v137
  %v209 = vunpack.c.l.b16 %v138
  %v210 = vunpack.c.l.b16 %v139
  %v211 = vunpack.c.l.b16 %v140
  %v212 = vunpack.c.l.b16 %v141
  %v213 = vunpack.c.l.b16 %v142
  %v214 = vunpack.c.l.b16 %v143
  %v215 = vunpack.c.l.b16 %v144
  %v216 = vunpack.c.l.b16 %v145
  %v217 = vpack.c.b16 %v186, %v185
  %v218 = vpack.c.b16 %v188, %v187
  %v219 = vpack.c.b16 %v190, %v189
  %v220 = vpack.c.b16 %v192, %v191
  %v221 = vpack.c.b16 %v194, %v193
  %v222 = vpack.c.b16 %v196, %v195
  %v223 = vpack.c.b16 %v198, %v197
  %v224 = vpack.c.b16 %v200, %v199
  %v225 = vpack.c.b16 %v202, %v201
  %v226 = vpack.c.b16 %v204, %v203
  %v227 = vpack.c.b16 %v206, %v205
  %v228 = vpack.c.b16 %v208, %v207
  %v229 = vpack.c.b16 %v210, %v209
  %v230 = vpack.c.b16 %v212, %v211
  %v231 = vpack.c.b16 %v214, %v213
  %v232 = vpack.c.b16 %v216, %v215
  %249 = vmatprep.subr.bf16.mxu0 0
  %250 = vmatpush1.bf16.msra.mxu0 %v217
  %251 = vmatprep.subr.bf16.mxu0 0
  %252 = vmatpush1.bf16.msra.mxu0 %v218
  %253 = vmatprep.subr.bf16.mxu0 0
  %254 = vmatpush1.bf16.msra.mxu0 %v219
  %255 = vmatprep.subr.bf16.mxu0 0
  %256 = vmatpush1.bf16.msra.mxu0 %v220
  %257 = vmatprep.subr.bf16.mxu0 0
  %258 = vmatpush1.bf16.msra.mxu0 %v221
  %259 = vmatprep.subr.bf16.mxu0 0
  %260 = vmatpush1.bf16.msra.mxu0 %v222
  %261 = vmatprep.subr.bf16.mxu0 0
  %262 = vmatpush1.bf16.msra.mxu0 %v223
  %263 = vmatprep.subr.bf16.mxu0 0
  %264 = vmatpush1.bf16.msra.mxu0 %v224
  %265 = vmatprep.subr.bf16.mxu0 0
  %266 = vmatpush1.bf16.msra.mxu0 %v225
  %267 = vmatprep.subr.bf16.mxu0 0
  %268 = vmatpush1.bf16.msra.mxu0 %v226
  %269 = vmatprep.subr.bf16.mxu0 0
  %270 = vmatpush1.bf16.msra.mxu0 %v227
  %271 = vmatprep.subr.bf16.mxu0 0
  %272 = vmatpush1.bf16.msra.mxu0 %v228
  %273 = vmatprep.subr.bf16.mxu0 0
  %274 = vmatpush1.bf16.msra.mxu0 %v229
  %275 = vmatprep.subr.bf16.mxu0 0
  %276 = vmatpush1.bf16.msra.mxu0 %v230
  %277 = vmatprep.subr.bf16.mxu0 0
  %278 = vmatpush1.bf16.msra.mxu0 %v231
  %279 = vmatprep.subr.bf16.mxu0 0
  %280 = vmatpush1.bf16.msra.mxu0 %v232
  %281 = vmatprep.mubr.bf16.mxu0 %v113
  %282 = vmatmul.mubr.bf16.gmra.mrb[0].mxu0 %v112
  %v283 = vpop.f32.mrb[0].mxu0
  %v284 = vadd.f32 %v151, %v283
  %v285 = vpop.f32.mrb[0].mxu0
  %v286 = vpop.f32.mrb[0].mxu0
  %v287 = vadd.f32 %v151, %v286
  %v288 = vpop.f32.mrb[0].mxu0
  %289 = vdwg.mxu0
  %vm290 = vcmask 80896
  %291 = vst.msk [vmem:[%s5] sm:$0xff] %vm290, %v284
  %292 = vst.msk [vmem:[%s5 + $0x8] sm:$0xff] %vm290, %v287
  // Predicated region
  $region22: #{mlp_forward.1} parent=0 // pred_check
    _
  $region23: #{mlp_forward.1} parent=0 // pred_check_branch
    %294 = sbr.rel (0) target = $region25
  $region24: #{mlp_forward.1} parent=0 // pred_region
    _
  $region25: #{mlp_forward.1} parent=0 // pred_fallthru
    _
  // Predicated region
  $region26: #{mlp_forward.1} parent=0 // pred_check
    _
  $region27: #{mlp_forward.1} parent=0 // pred_check_branch
    %296 = sbr.rel (0) target = $region29
  $region28: #{mlp_forward.1} parent=0 // pred_region
    _
  $region29: #{mlp_forward.1} parent=0 // pred_fallthru
    _

</llo_original>
